<compile_context>
chip_gen: v5e
topology: v5e:2x2
jax: 0.10.0
libtpu: 0.0.40
codegen_flags: <defaults>
</compile_context>

<pallas_src>
import math

import jax
import jax.numpy as jnp
from jax.experimental import pallas as pl
from jax.experimental.pallas import tpu as pltpu


# --------------------------------------------------------------------------- #
# Pallas kernels
# --------------------------------------------------------------------------- #
def _channel_stats_kernel(x_ref, sum_ref, max_ref):
    """Per-channel sum & max over the spatial (lane) axis. Grid: (B, HW_tiles)."""
    t = pl.program_id(1)

    @pl.when(t == 0)
    def _():
        sum_ref[...] = jnp.zeros_like(sum_ref)
        max_ref[...] = jnp.full_like(max_ref, -jnp.inf)

    x = x_ref[...].astype(jnp.float32)                      # (1, C, T)
    sum_ref[...] += jnp.sum(x, axis=2)[:, None, :]          # (1, 1, C)
    max_ref[...] = jnp.maximum(max_ref[...], jnp.max(x, axis=2)[:, None, :])


def _spatial_stats_kernel(x_ref, gc_ref, sum_ref, max_ref):
    """Per-pixel sum & max over channels of x * g_c. Grid: (B, HW_tiles)."""
    x = x_ref[...].astype(jnp.float32)                      # (1, C, T)
    gc = gc_ref[0].astype(jnp.float32)                      # (1, C)
    xg = x * gc[:, :, None]                                 # channel-gated block
    sum_ref[...] = jnp.sum(xg, axis=1)[:, None, :]          # (1, 1, T)
    max_ref[...] = jnp.max(xg, axis=1)[:, None, :]          # (1, 1, T)


def _scale_kernel(x_ref, gc_ref, gs_ref, o_ref):
    """out = x * g_c * g_s  (x1 = x*g_c is never materialized in HBM)."""
    x = x_ref[...].astype(jnp.float32)                      # (1, C, T)
    gc = gc_ref[0].astype(jnp.float32)                      # (1, C)
    gs = gs_ref[0].astype(jnp.float32)                      # (1, T)
    o_ref[...] = (x * gc[:, :, None] * gs[:, None, :]).astype(o_ref.dtype)


# --------------------------------------------------------------------------- #
# Wrapper
# --------------------------------------------------------------------------- #
def _pick_hw_tile(hw):
    """Largest lane-dense tile (multiple of 128) that divides HW, else full HW."""
    for cand in (512, 256, 128):
        if hw % cand == 0:
            return cand
    return hw


def cbam_forward(x, w_fc1, w_fc2, w_spatial):
    """
    x:         (B, C, H, W)
    w_fc1:     (C//ratio, C)        Conv2d(C, C//ratio, 1, bias=False) weight (squeezed)
    w_fc2:     (C, C//ratio)        Conv2d(C//ratio, C, 1, bias=False) weight (squeezed)
    w_spatial: (1, 2, k, k)         Conv2d(2, 1, k, padding=(k-1)//2, bias=False) weight
    """
    B, C, H, W = x.shape
    HW = H * W
    T = _pick_hw_tile(HW)
    nt = HW // T
    isz = x.dtype.itemsize
    x3 = x.reshape(B, C, HW)                                # lane-dense layout

    # ---- pass 1: per-channel sum & max over HW (streaming reduce) ----------
    ch_sum, ch_max = pl.pallas_call(
        _channel_stats_kernel,
        out_shape=(jax.ShapeDtypeStruct((B, 1, C), jnp.float32),
                   jax.ShapeDtypeStruct((B, 1, C), jnp.float32)),
        grid_spec=pltpu.PrefetchScalarGridSpec(
            num_scalar_prefetch=0,
            grid=(B, nt),
            in_specs=[pl.BlockSpec((1, C, T), lambda b, t: (b, 0, t))],
            out_specs=[pl.BlockSpec((1, 1, C), lambda b, t: (b, 0, 0)),
                       pl.BlockSpec((1, 1, C), lambda b, t: (b, 0, 0))],
        ),
        compiler_params=pltpu.CompilerParams(
            dimension_semantics=("parallel", "arbitrary")),
        cost_estimate=pl.CostEstimate(
            flops=2 * B * C * HW, transcendentals=0,
            bytes_accessed=B * C * HW * isz + 2 * B * C * 4),
    )(x3)

    # ---- channel gate: shared MLP on avg & max pooled features -------------
    # TODO(synk): tiny O(B*C) MLP kept in plain JAX between streaming passes (perf review).
    avg = ch_sum.reshape(B, C) / float(HW)
    mx = ch_max.reshape(B, C)

    def _mlp(v):
        h = jnp.maximum(v @ w_fc1.T.astype(jnp.float32), 0.0)   # relu(fc1)
        return h @ w_fc2.T.astype(jnp.float32)                  # fc2

    gate_c = jax.nn.sigmoid(_mlp(avg) + _mlp(mx))                # (B, C), f32
    gate_c3 = gate_c.reshape(B, 1, C)

    # ---- pass 2: per-pixel mean & max over channels of x * g_c -------------
    sp_sum, sp_max = pl.pallas_call(
        _spatial_stats_kernel,
        out_shape=(jax.ShapeDtypeStruct((B, 1, HW), jnp.float32),
                   jax.ShapeDtypeStruct((B, 1, HW), jnp.float32)),
        grid_spec=pltpu.PrefetchScalarGridSpec(
            num_scalar_prefetch=0,
            grid=(B, nt),
            in_specs=[pl.BlockSpec((1, C, T), lambda b, t: (b, 0, t)),
                      pl.BlockSpec((1, 1, C), lambda b, t: (b, 0, 0))],
            out_specs=[pl.BlockSpec((1, 1, T), lambda b, t: (b, 0, t)),
                       pl.BlockSpec((1, 1, T), lambda b, t: (b, 0, t))],
        ),
        compiler_params=pltpu.CompilerParams(
            dimension_semantics=("parallel", "parallel")),
        cost_estimate=pl.CostEstimate(
            flops=3 * B * C * HW, transcendentals=0,
            bytes_accessed=B * C * HW * isz + B * C * 4 + 2 * B * HW * 4),
    )(x3, gate_c3)

    # ---- spatial gate: 7x7 conv over [mean_c, max_c] + sigmoid --------------
    # TODO(synk): tiny O(B*HW*k^2) 2-channel conv kept in plain JAX (perf review).
    k = w_spatial.shape[-1]
    pad = (k - 1) // 2
    sa_in = jnp.concatenate(
        [(sp_sum / float(C)).reshape(B, 1, H, W), sp_max.reshape(B, 1, H, W)],
        axis=1)                                              # (B, 2, H, W)
    conv = jax.lax.conv_general_dilated(
        sa_in, w_spatial.astype(jnp.float32), (1, 1),
        ((pad, pad), (pad, pad)),
        dimension_numbers=("NCHW", "OIHW", "NCHW"))          # (B, 1, H, W)
    gate_s3 = jax.nn.sigmoid(conv).reshape(B, 1, HW)

    # ---- pass 3: out = x * g_c * g_s (lane-dense streaming scale) -----------
    out3 = pl.pallas_call(
        _scale_kernel,
        out_shape=jax.ShapeDtypeStruct((B, C, HW), x.dtype),
        grid_spec=pltpu.PrefetchScalarGridSpec(
            num_scalar_prefetch=0,
            grid=(B, nt),
            in_specs=[pl.BlockSpec((1, C, T), lambda b, t: (b, 0, t)),
                      pl.BlockSpec((1, 1, C), lambda b, t: (b, 0, 0)),
                      pl.BlockSpec((1, 1, T), lambda b, t: (b, 0, t))],
            out_specs=pl.BlockSpec((1, C, T), lambda b, t: (b, 0, t)),
        ),
        compiler_params=pltpu.CompilerParams(
            dimension_semantics=("parallel", "parallel")),
        cost_estimate=pl.CostEstimate(
            flops=2 * B * C * HW, transcendentals=0,
            bytes_accessed=2 * B * C * HW * isz + B * C * 4 + B * HW * 4),
    )(x3, gate_c3, gate_s3)

    return out3.reshape(B, C, H, W)


cbam = jax.jit(cbam_forward)


# --------------------------------------------------------------------------- #
# Pure-JAX reference matching the PyTorch CBAM module
# --------------------------------------------------------------------------- #
def cbam_reference(x, w_fc1, w_fc2, w_spatial):
    B, C, H, W = x.shape
    avg = jnp.mean(x, axis=(2, 3))
    mx = jnp.max(x, axis=(2, 3))

    def _mlp(v):
        h = jnp.maximum(v @ w_fc1.T, 0.0)
        return h @ w_fc2.T

    gate_c = jax.nn.sigmoid(_mlp(avg) + _mlp(mx))            # (B, C)
    x1 = x * gate_c[:, :, None, None]

    sp_avg = jnp.mean(x1, axis=1, keepdims=True)             # (B, 1, H, W)
    sp_max = jnp.max(x1, axis=1, keepdims=True)
    sa = jnp.concatenate([sp_avg, sp_max], axis=1)           # (B, 2, H, W)
    pad = (w_spatial.shape[-1] - 1) // 2
    conv = jax.lax.conv_general_dilated(
        sa, w_spatial, (1, 1), ((pad, pad), (pad, pad)),
        dimension_numbers=("NCHW", "OIHW", "NCHW"))
    gate_s = jax.nn.sigmoid(conv)                            # (B, 1, H, W)
    return x1 * gate_s


if __name__ == "__main__":
    # CBAM(in_channel=8, ratio=4, kernel_size=7)
    B, C, H, W = 2, 8, 16, 16
    ratio = 4
    kernel_size = 7
    hidden = C // ratio

    key = jax.random.PRNGKey(0)
    kx, k1, k2, k3 = jax.random.split(key, 4)
    x = jax.random.normal(kx, (B, C, H, W), dtype=jnp.float32)
    w_fc1 = jax.random.normal(k1, (hidden, C), dtype=jnp.float32) / math.sqrt(C)
    w_fc2 = jax.random.normal(k2, (C, hidden), dtype=jnp.float32) / math.sqrt(hidden)
    w_sp = jax.random.normal(k3, (1, 2, kernel_size, kernel_size), dtype=jnp.float32) * 0.1

    out = cbam(x, w_fc1, w_fc2, w_sp)
    out = jax.block_until_ready(out)

    ref = cbam_reference(x, w_fc1, w_fc2, w_sp)
    assert out.shape == x.shape
    assert jnp.allclose(out, ref, atol=1e-5, rtol=1e-5), "Pallas CBAM output mismatch vs reference"

    print("KERNEL_OK")
</pallas_src>

<mosaic_0001>
module attributes {stable_mosaic.version = 11 : i64} {
  func.func @_channel_stats_kernel(%arg0: i32, %arg1: i32, %arg2: memref<1x8x256xf32, #tpu.memory_space<vmem>>, %arg3: memref<1x1x8xf32, #tpu.memory_space<vmem>>, %arg4: memref<1x1x8xf32, #tpu.memory_space<vmem>>) attributes {dimension_semantics = [#tpu.dimension_semantics<parallel>, #tpu.dimension_semantics<arbitrary>], iteration_bounds = array<i64: 2, 1>, scalar_prefetch = 0 : i64, scratch_operands = 0 : i64, tpu.core_type = #tpu.core_type<tc>, window_params = [{transform_indices = @transform_0, window_bounds = array<i64: 1, 8, 256>}, {transform_indices = @transform_1, window_bounds = array<i64: 1, 1, 8>}, {transform_indices = @transform_2, window_bounds = array<i64: 1, 1, 8>}]} {
    %c0_i32 = arith.constant 0 : i32
    %0 = arith.cmpi eq, %arg1, %c0_i32 : i32
    %1 = arith.extui %0 : i1 to i32
    %c0_i32_0 = arith.constant 0 : i32
    %2 = arith.cmpi ne, %1, %c0_i32_0 : i32
    scf.if %2 {
      %cst_16 = arith.constant 0.000000e+00 : f32
      %14 = vector.broadcast %cst_16 : f32 to vector<1x1x8xf32>
      %c0_17 = arith.constant 0 : index
      %c0_18 = arith.constant 0 : index
      %c0_19 = arith.constant 0 : index
      %15 = vector.load %arg3[%c0_17, %c0_18, %c0_19] : memref<1x1x8xf32, #tpu.memory_space<vmem>>, vector<1x1x8xf32>
      tpu.vector_store %arg3[%c0_17, %c0_18, %c0_19], %14 {strides = array<i32>} : memref<1x1x8xf32, #tpu.memory_space<vmem>>, vector<1x1x8xf32>,
      %cst_20 = arith.constant 0xFF800000 : f32
      %16 = vector.broadcast %cst_20 : f32 to vector<1x1x8xf32>
      %c0_21 = arith.constant 0 : index
      %c0_22 = arith.constant 0 : index
      %c0_23 = arith.constant 0 : index
      %17 = vector.load %arg4[%c0_21, %c0_22, %c0_23] : memref<1x1x8xf32, #tpu.memory_space<vmem>>, vector<1x1x8xf32>
      tpu.vector_store %arg4[%c0_21, %c0_22, %c0_23], %16 {strides = array<i32>} : memref<1x1x8xf32, #tpu.memory_space<vmem>>, vector<1x1x8xf32>,
    } else {
    }
    %c0 = arith.constant 0 : index
    %c0_1 = arith.constant 0 : index
    %c0_2 = arith.constant 0 : index
    %3 = vector.load %arg2[%c0, %c0_1, %c0_2] : memref<1x8x256xf32, #tpu.memory_space<vmem>>, vector<1x8x256xf32>
    %c0_3 = arith.constant 0 : index
    %c0_4 = arith.constant 0 : index
    %c0_5 = arith.constant 0 : index
    %4 = vector.load %arg3[%c0_3, %c0_4, %c0_5] : memref<1x1x8xf32, #tpu.memory_space<vmem>>, vector<1x1x8xf32>
    %cst = arith.constant dense<0.000000e+00> : vector<1x8xf32>
    %5 = vector.multi_reduction <add>, %3, %cst [2] : vector<1x8x256xf32> to vector<1x8xf32>
    %6 = vector.shape_cast %5 : vector<1x8xf32> to vector<1x1x8xf32>
    %7 = arith.addf %4, %6 : vector<1x1x8xf32>
    %c0_6 = arith.constant 0 : index
    %c0_7 = arith.constant 0 : index
    %c0_8 = arith.constant 0 : index
    %8 = vector.load %arg3[%c0_6, %c0_7, %c0_8] : memref<1x1x8xf32, #tpu.memory_space<vmem>>, vector<1x1x8xf32>
    tpu.vector_store %arg3[%c0_6, %c0_7, %c0_8], %7 {strides = array<i32>} : memref<1x1x8xf32, #tpu.memory_space<vmem>>, vector<1x1x8xf32>,
    %c0_9 = arith.constant 0 : index
    %c0_10 = arith.constant 0 : index
    %c0_11 = arith.constant 0 : index
    %9 = vector.load %arg4[%c0_9, %c0_10, %c0_11] : memref<1x1x8xf32, #tpu.memory_space<vmem>>, vector<1x1x8xf32>
    %cst_12 = arith.constant dense<0xFF800000> : vector<1x8xf32>
    %10 = vector.multi_reduction <maximumf>, %3, %cst_12 [2] : vector<1x8x256xf32> to vector<1x8xf32>
    %11 = vector.shape_cast %10 : vector<1x8xf32> to vector<1x1x8xf32>
    %12 = arith.maximumf %9, %11 : vector<1x1x8xf32>
    %c0_13 = arith.constant 0 : index
    %c0_14 = arith.constant 0 : index
    %c0_15 = arith.constant 0 : index
    %13 = vector.load %arg4[%c0_13, %c0_14, %c0_15] : memref<1x1x8xf32, #tpu.memory_space<vmem>>, vector<1x1x8xf32>
    tpu.vector_store %arg4[%c0_13, %c0_14, %c0_15], %12 {strides = array<i32>} : memref<1x1x8xf32, #tpu.memory_space<vmem>>, vector<1x1x8xf32>,
    return
  }
  func.func @transform_0(%arg0: i32, %arg1: i32) -> (i32, i32, i32) {
    %c0_i32 = arith.constant 0 : i32
    %c0_i32_0 = arith.constant 0 : i32
    return %arg0, %c0_i32, %arg1 : i32, i32, i32
  }
  func.func @transform_1(%arg0: i32, %arg1: i32) -> (i32, i32, i32) {
    %c0_i32 = arith.constant 0 : i32
    %c0_i32_0 = arith.constant 0 : i32
    %c0_i32_1 = arith.constant 0 : i32
    return %arg0, %c0_i32, %c0_i32_0 : i32, i32, i32
  }
  func.func @transform_2(%arg0: i32, %arg1: i32) -> (i32, i32, i32) {
    %c0_i32 = arith.constant 0 : i32
    %c0_i32_0 = arith.constant 0 : i32
    %c0_i32_1 = arith.constant 0 : i32
    return %arg0, %c0_i32, %c0_i32_0 : i32, i32, i32
  }
}

module attributes {stable_mosaic.version = 11 : i64} {
  func.func @_spatial_stats_kernel(%arg0: i32, %arg1: i32, %arg2: memref<1x8x256xf32, #tpu.memory_space<vmem>>, %arg3: memref<1x1x8xf32, #tpu.memory_space<vmem>>, %arg4: memref<1x1x256xf32, #tpu.memory_space<vmem>>, %arg5: memref<1x1x256xf32, #tpu.memory_space<vmem>>) attributes {dimension_semantics = [#tpu.dimension_semantics<parallel>, #tpu.dimension_semantics<parallel>], iteration_bounds = array<i64: 2, 1>, scalar_prefetch = 0 : i64, scratch_operands = 0 : i64, tpu.core_type = #tpu.core_type<tc>, window_params = [{transform_indices = @transform_0, window_bounds = array<i64: 1, 8, 256>}, {transform_indices = @transform_1, window_bounds = array<i64: 1, 1, 8>}, {transform_indices = @transform_2, window_bounds = array<i64: 1, 1, 256>}, {transform_indices = @transform_3, window_bounds = array<i64: 1, 1, 256>}]} {
    %c0 = arith.constant 0 : index
    %c0_0 = arith.constant 0 : index
    %c0_1 = arith.constant 0 : index
    %0 = vector.load %arg2[%c0, %c0_0, %c0_1] : memref<1x8x256xf32, #tpu.memory_space<vmem>>, vector<1x8x256xf32>
    %c0_2 = arith.constant 0 : index
    %c0_3 = arith.constant 0 : index
    %c0_4 = arith.constant 0 : index
    %1 = vector.load %arg3[%c0_2, %c0_3, %c0_4] : memref<1x1x8xf32, #tpu.memory_space<vmem>>, vector<1x1x8xf32>
    %2 = vector.shape_cast %1 : vector<1x1x8xf32> to vector<1x8xf32>
    %3 = vector.shape_cast %2 : vector<1x8xf32> to vector<1x8x1xf32>
    %4 = vector.broadcast %3 : vector<1x8x1xf32> to vector<1x8x256xf32>
    %5 = arith.mulf %0, %4 : vector<1x8x256xf32>
    %cst = arith.constant dense<0.000000e+00> : vector<1x256xf32>
    %6 = vector.multi_reduction <add>, %5, %cst [1] : vector<1x8x256xf32> to vector<1x256xf32>
    %7 = vector.shape_cast %6 : vector<1x256xf32> to vector<1x1x256xf32>
    %c0_5 = arith.constant 0 : index
    %c0_6 = arith.constant 0 : index
    %c0_7 = arith.constant 0 : index
    %8 = vector.load %arg4[%c0_5, %c0_6, %c0_7] : memref<1x1x256xf32, #tpu.memory_space<vmem>>, vector<1x1x256xf32>
    tpu.vector_store %arg4[%c0_5, %c0_6, %c0_7], %7 {strides = array<i32>} : memref<1x1x256xf32, #tpu.memory_space<vmem>>, vector<1x1x256xf32>,
    %cst_8 = arith.constant dense<0xFF800000> : vector<1x256xf32>
    %9 = vector.multi_reduction <maximumf>, %5, %cst_8 [1] : vector<1x8x256xf32> to vector<1x256xf32>
    %10 = vector.shape_cast %9 : vector<1x256xf32> to vector<1x1x256xf32>
    %c0_9 = arith.constant 0 : index
    %c0_10 = arith.constant 0 : index
    %c0_11 = arith.constant 0 : index
    %11 = vector.load %arg5[%c0_9, %c0_10, %c0_11] : memref<1x1x256xf32, #tpu.memory_space<vmem>>, vector<1x1x256xf32>
    tpu.vector_store %arg5[%c0_9, %c0_10, %c0_11], %10 {strides = array<i32>} : memref<1x1x256xf32, #tpu.memory_space<vmem>>, vector<1x1x256xf32>,
    return
  }
  func.func @transform_0(%arg0: i32, %arg1: i32) -> (i32, i32, i32) {
    %c0_i32 = arith.constant 0 : i32
    %c0_i32_0 = arith.constant 0 : i32
    return %arg0, %c0_i32, %arg1 : i32, i32, i32
  }
  func.func @transform_1(%arg0: i32, %arg1: i32) -> (i32, i32, i32) {
    %c0_i32 = arith.constant 0 : i32
    %c0_i32_0 = arith.constant 0 : i32
    %c0_i32_1 = arith.constant 0 : i32
    return %arg0, %c0_i32, %c0_i32_0 : i32, i32, i32
  }
  func.func @transform_2(%arg0: i32, %arg1: i32) -> (i32, i32, i32) {
    %c0_i32 = arith.constant 0 : i32
    %c0_i32_0 = arith.constant 0 : i32
    return %arg0, %c0_i32, %arg1 : i32, i32, i32
  }
  func.func @transform_3(%arg0: i32, %arg1: i32) -> (i32, i32, i32) {
    %c0_i32 = arith.constant 0 : i32
    %c0_i32_0 = arith.constant 0 : i32
    return %arg0, %c0_i32, %arg1 : i32, i32, i32
  }
}

module attributes {stable_mosaic.version = 11 : i64} {
  func.func @_scale_kernel(%arg0: i32, %arg1: i32, %arg2: memref<1x8x256xf32, #tpu.memory_space<vmem>>, %arg3: memref<1x1x8xf32, #tpu.memory_space<vmem>>, %arg4: memref<1x1x256xf32, #tpu.memory_space<vmem>>, %arg5: memref<1x8x256xf32, #tpu.memory_space<vmem>>) attributes {dimension_semantics = [#tpu.dimension_semantics<parallel>, #tpu.dimension_semantics<parallel>], iteration_bounds = array<i64: 2, 1>, scalar_prefetch = 0 : i64, scratch_operands = 0 : i64, tpu.core_type = #tpu.core_type<tc>, window_params = [{transform_indices = @transform_0, window_bounds = array<i64: 1, 8, 256>}, {transform_indices = @transform_1, window_bounds = array<i64: 1, 1, 8>}, {transform_indices = @transform_2, window_bounds = array<i64: 1, 1, 256>}, {transform_indices = @transform_3, window_bounds = array<i64: 1, 8, 256>}]} {
    %c0 = arith.constant 0 : index
    %c0_0 = arith.constant 0 : index
    %c0_1 = arith.constant 0 : index
    %0 = vector.load %arg2[%c0, %c0_0, %c0_1] : memref<1x8x256xf32, #tpu.memory_space<vmem>>, vector<1x8x256xf32>
    %c0_2 = arith.constant 0 : index
    %c0_3 = arith.constant 0 : index
    %c0_4 = arith.constant 0 : index
    %1 = vector.load %arg3[%c0_2, %c0_3, %c0_4] : memref<1x1x8xf32, #tpu.memory_space<vmem>>, vector<1x1x8xf32>
    %2 = vector.shape_cast %1 : vector<1x1x8xf32> to vector<1x8xf32>
    %c0_5 = arith.constant 0 : index
    %c0_6 = arith.constant 0 : index
    %c0_7 = arith.constant 0 : index
    %3 = vector.load %arg4[%c0_5, %c0_6, %c0_7] : memref<1x1x256xf32, #tpu.memory_space<vmem>>, vector<1x1x256xf32>
    %4 = vector.shape_cast %3 : vector<1x1x256xf32> to vector<1x256xf32>
    %5 = vector.shape_cast %2 : vector<1x8xf32> to vector<1x8x1xf32>
    %6 = vector.broadcast %5 : vector<1x8x1xf32> to vector<1x8x256xf32>
    %7 = arith.mulf %0, %6 : vector<1x8x256xf32>
    %8 = vector.shape_cast %4 : vector<1x256xf32> to vector<1x1x256xf32>
    %9 = vector.broadcast %8 : vector<1x1x256xf32> to vector<1x8x256xf32>
    %10 = arith.mulf %7, %9 : vector<1x8x256xf32>
    %c0_8 = arith.constant 0 : index
    %c0_9 = arith.constant 0 : index
    %c0_10 = arith.constant 0 : index
    %11 = vector.load %arg5[%c0_8, %c0_9, %c0_10] : memref<1x8x256xf32, #tpu.memory_space<vmem>>, vector<1x8x256xf32>
    tpu.vector_store %arg5[%c0_8, %c0_9, %c0_10], %10 {strides = array<i32>} : memref<1x8x256xf32, #tpu.memory_space<vmem>>, vector<1x8x256xf32>,
    return
  }
  func.func @transform_0(%arg0: i32, %arg1: i32) -> (i32, i32, i32) {
    %c0_i32 = arith.constant 0 : i32
    %c0_i32_0 = arith.constant 0 : i32
    return %arg0, %c0_i32, %arg1 : i32, i32, i32
  }
  func.func @transform_1(%arg0: i32, %arg1: i32) -> (i32, i32, i32) {
    %c0_i32 = arith.constant 0 : i32
    %c0_i32_0 = arith.constant 0 : i32
    %c0_i32_1 = arith.constant 0 : i32
    return %arg0, %c0_i32, %c0_i32_0 : i32, i32, i32
  }
  func.func @transform_2(%arg0: i32, %arg1: i32) -> (i32, i32, i32) {
    %c0_i32 = arith.constant 0 : i32
    %c0_i32_0 = arith.constant 0 : i32
    return %arg0, %c0_i32, %arg1 : i32, i32, i32
  }
  func.func @transform_3(%arg0: i32, %arg1: i32) -> (i32, i32, i32) {
    %c0_i32 = arith.constant 0 : i32
    %c0_i32_0 = arith.constant 0 : i32
    return %arg0, %c0_i32, %arg1 : i32, i32, i32
  }
}

</mosaic_0001>

<llo_original>
// kernel: cbam_forward.4
$region0: #{cbam_forward.4}
  #allocation0 [shape = 'u32[]', space=smem, size = 0x4, offset = 0x4, fixed_abs, tag = 'smem constant byte address 0x4 - core index']
  #allocation1 [shape = 'u32[72,128]{1,0:T(1,128)}', space=vmem, size = 0x9000, scoped, tag = 'internal scratch']
  %s0 = inlined_call_operand.vmem [shape: f32[2,8,256], index: 0, kind: input, shape index: {}]
  %s1 = inlined_call_operand.vmem [shape: f32[2,1,8], index: 1, kind: input, shape index: {}]
  %s2 = inlined_call_operand.vmem [shape: f32[2,1,256], index: 2, kind: output, shape index: {0}]
  %s3 = inlined_call_operand.vmem [shape: f32[2,1,256], index: 3, kind: output, shape index: {1}]
  %4 = xla_tuple %s2, %s3
  %s5 = sld [smem:[#allocation0]]
  $region49: #{cbam_forward.4} parent=0
    _
  %s7 = ssub.s32 1, %s5
  %s8 = scalar_select 0, %s7, %s5
  loop: start=0, step=1, limit=4
  $region2: #{cbam_forward.4} parent=0 // loop_pre_header
    _
  $region3: #{cbam_forward.4} parent=0 // loop_header
    %s10 = sphi 0, %s14
    %p11 = scmp.ge.s32.totalorder %s10, 4
    %s17 = sphi 0, %s29
    %s18 = sphi 0, %s25
    %s19 = sphi 0, %s17
    %s20 = sphi 0, %s18
    %s21 = sphi 0, %s19
    %s22 = sphi 0, %s20
    %s34 = sphi 0, %s36
    %s37 = sphi 0, %s34
    %s38 = sphi 0, %s37
    %s54 = sphi 0, %s38
    %s60 = sphi 0, %s62
    %s63 = sphi 0, %s60
    %s64 = sphi 0, %s63
    %s80 = sphi 0, %s64
    %s88 = sphi 0, %s90
    %s91 = sphi 0, %s88
    %s92 = sphi 0, %s91
    %s108 = sphi 0, %s92
    %s116 = sphi 0, %s118
    %s119 = sphi 0, %s116
    %s120 = sphi 0, %s119
    %s136 = sphi 0, %s120
  $region4: #{cbam_forward.4} parent=0 // loop_header_branch
    %13 = sbr.rel (%p11) target = $region8
  $region5: #{cbam_forward.4} parent=0 // loop_body
    %s15 = ssub.s32 %s10, 1
    %s16 = ssub.s32 %s10, 2
    %s23 = sadd.s32 1, %s18
    %p24 = scmp.ge.s32.totalorder %s23, 1
    %s25 = scalar_select %p24, 0, %s23
    %s26 = sadd.s32 1, %s17
    %s27 = scalar_select %p24, %s26, %s17
    %p28 = scmp.ge.s32.totalorder %s27, 2
    %s29 = scalar_select %p28, 0, %s27
    %s30 = ssub.s32 %s17, %s29
    %s31 = ssub.s32 %s18, %s25
    %s32 = sor.u32 %s30, %s31
    %p33 = scmp.eq.s32.totalorder %s32, 0
    %s35 = sadd.s32 %s34, 1
    %s36 = scalar_select %p33, %s34, %s35
    %p39 = pneg %p33
    %p40 = scmp.eq.s32.totalorder %s10, 1
    %p41 = por %p39, %p40
    %p42 = scmp.ne.s32.totalorder %s34, %s37
    %p43 = scmp.eq.s32.totalorder %s10, 0
    %p44 = por %p42, %p43
    %p45 = scmp.ne.s32.totalorder %s34, %s37
    %p46 = scmp.eq.s32.totalorder %s15, 1
    %p47 = por %p45, %p46
    %p48 = scmp.ne.s32.totalorder %s37, %s38
    %p49 = scmp.eq.s32.totalorder %s15, 0
    %p50 = por %p48, %p49
    %p51 = scmp.ne.s32.totalorder %s37, %s38
    %p52 = scmp.eq.s32.totalorder %s16, 1
    %p53 = por %p51, %p52
    %p55 = scmp.ne.s32.totalorder %s38, %s54
    %p56 = scmp.eq.s32.totalorder %s16, 0
    %p57 = por %p55, %p56
    %s58 = ssub.s32 %s17, %s29
    %p59 = scmp.eq.s32.totalorder %s58, 0
    %s61 = sadd.s32 %s60, 1
    %s62 = scalar_select %p59, %s60, %s61
    %p65 = pneg %p59
    %p66 = scmp.eq.s32.totalorder %s10, 1
    %p67 = por %p65, %p66
    %p68 = scmp.ne.s32.totalorder %s60, %s63
    %p69 = scmp.eq.s32.totalorder %s10, 0
    %p70 = por %p68, %p69
    %p71 = scmp.ne.s32.totalorder %s60, %s63
    %p72 = scmp.eq.s32.totalorder %s15, 1
    %p73 = por %p71, %p72
    %p74 = scmp.ne.s32.totalorder %s63, %s64
    %p75 = scmp.eq.s32.totalorder %s15, 0
    %p76 = por %p74, %p75
    %p77 = scmp.ne.s32.totalorder %s63, %s64
    %p78 = scmp.eq.s32.totalorder %s16, 1
    %p79 = por %p77, %p78
    %p81 = scmp.ne.s32.totalorder %s64, %s80
    %p82 = scmp.eq.s32.totalorder %s16, 0
    %p83 = por %p81, %p82
    %s84 = ssub.s32 %s17, %s29
    %s85 = ssub.s32 %s18, %s25
    %s86 = sor.u32 %s84, %s85
    %p87 = scmp.eq.s32.totalorder %s86, 0
    %s89 = sadd.s32 %s88, 1
    %s90 = scalar_select %p87, %s88, %s89
    %p93 = pneg %p87
    %p94 = scmp.eq.s32.totalorder %s10, 1
    %p95 = por %p93, %p94
    %p96 = scmp.ne.s32.totalorder %s88, %s91
    %p97 = scmp.eq.s32.totalorder %s10, 0
    %p98 = por %p96, %p97
    %p99 = scmp.ne.s32.totalorder %s88, %s91
    %p100 = scmp.eq.s32.totalorder %s15, 1
    %p101 = por %p99, %p100
    %p102 = scmp.ne.s32.totalorder %s91, %s92
    %p103 = scmp.eq.s32.totalorder %s15, 0
    %p104 = por %p102, %p103
    %p105 = scmp.ne.s32.totalorder %s91, %s92
    %p106 = scmp.eq.s32.totalorder %s16, 1
    %p107 = por %p105, %p106
    %p109 = scmp.ne.s32.totalorder %s92, %s108
    %p110 = scmp.eq.s32.totalorder %s16, 0
    %p111 = por %p109, %p110
    %s112 = ssub.s32 %s17, %s29
    %s113 = ssub.s32 %s18, %s25
    %s114 = sor.u32 %s112, %s113
    %p115 = scmp.eq.s32.totalorder %s114, 0
    %s117 = sadd.s32 %s116, 1
    %s118 = scalar_select %p115, %s116, %s117
    %p121 = pneg %p115
    %p122 = scmp.eq.s32.totalorder %s10, 1
    %p123 = por %p121, %p122
    %p124 = scmp.ne.s32.totalorder %s116, %s119
    %p125 = scmp.eq.s32.totalorder %s10, 0
    %p126 = por %p124, %p125
    %p127 = scmp.ne.s32.totalorder %s116, %s119
    %p128 = scmp.eq.s32.totalorder %s15, 1
    %p129 = por %p127, %p128
    %p130 = scmp.ne.s32.totalorder %s119, %s120
    %p131 = scmp.eq.s32.totalorder %s15, 0
    %p132 = por %p130, %p131
    %p133 = scmp.ne.s32.totalorder %s119, %s120
    %p134 = scmp.eq.s32.totalorder %s16, 1
    %p135 = por %p133, %p134
    %p137 = scmp.ne.s32.totalorder %s120, %s136
    %p138 = scmp.eq.s32.totalorder %s16, 0
    %p139 = por %p137, %p138
    %p140 = scmp.le.s32.totalorder 1, %s10
    %p141 = scmp.lt.s32.totalorder %s10, 3
    %p142 = pnand %p140, %p141
    %p143 = pneg %p142
    // Predicated region
    $region9: #{cbam_forward.4} parent=5 // pred_check
      _
    $region10: #{cbam_forward.4} parent=5 // pred_check_branch
      %145 = sbr.rel (%p142) target = $region12
    $region11: #{cbam_forward.4} parent=5 // pred_region
      %s146 = ssub.s32 %s10, 1
    $region12: #{cbam_forward.4} parent=5 // pred_fallthru
      _
    %p147 = scmp.lt.s32.totalorder %s10, 2
    // Predicated region
    $region13: #{cbam_forward.4} parent=5 // pred_check
      %p148 = pneg %p147
    $region14: #{cbam_forward.4} parent=5 // pred_check_branch
      %150 = sbr.rel (%p148) target = $region16
    $region15: #{cbam_forward.4} parent=5 // pred_region
      // Predicated region
      $region17: #{cbam_forward.4} parent=15 // pred_check
        %p151 = pneg %p44
      $region18: #{cbam_forward.4} parent=15 // pred_check_branch
        %153 = sbr.rel (%p151) target = $region20
      $region19: #{cbam_forward.4} parent=15 // pred_region
        %s154 = smul.u32 2, %s18
        %p155 = scmp.lt.s32.totalorder %s17, 1
        %s156 = scalar_select %p155, %s17, 1
        %p157 = scmp.lt.s32.totalorder %s154, 1
        %s158 = scalar_select %p157, %s154, 1
        %s159 = smul.addr %s156, 2
        %s160 = sadd.s32 %s158, %s159
        %s161 = smul.addr %s160, 8
        %s162 = scalar_lea.vmem %s0, %s161
        %s163 = smul.u32 2, %s18
      $region20: #{cbam_forward.4} parent=15 // pred_fallthru
        _
      // Predicated region
      $region21: #{cbam_forward.4} parent=15 // pred_check
        %p164 = pneg %p70
      $region22: #{cbam_forward.4} parent=15 // pred_check_branch
        %166 = sbr.rel (%p164) target = $region24
      $region23: #{cbam_forward.4} parent=15 // pred_region
        %p167 = scmp.lt.s32.totalorder %s17, 1
        %s168 = scalar_select %p167, %s17, 1
        %s169 = scalar_lea.vmem %s1, %s168
      $region24: #{cbam_forward.4} parent=15 // pred_fallthru
        _
    $region16: #{cbam_forward.4} parent=5 // pred_fallthru
      _
    %p170 = scmp.le.s32.totalorder 1, %s10
    %p171 = scmp.lt.s32.totalorder %s10, 3
    %p172 = pnand %p170, %p171
    %p173 = pneg %p172
    // Predicated region
    $region25: #{cbam_forward.4} parent=5 // pred_check
      _
    $region26: #{cbam_forward.4} parent=5 // pred_check_branch
      %175 = sbr.rel (%p172) target = $region28
    $region27: #{cbam_forward.4} parent=5 // pred_region
      %s176 = ssub.s32 %s10, 1
      %s177 = smul.u32 2, %s20
      %p178 = scmp.lt.s32.totalorder %s19, 1
      %s179 = scalar_select %p178, %s19, 1
      %p180 = scmp.lt.s32.totalorder %s177, 1
      %s181 = scalar_select %p180, %s177, 1
      %s182 = smul.addr %s179, 2
      %s183 = sadd.s32 %s181, %s182
      %s184 = smul.addr %s183, 8
      %s185 = scalar_lea.vmem %s0, %s184
      %p186 = pneg %p50
      %p187 = pneg %p47
      %p188 = scmp.lt.s32.totalorder %s19, 1
      %s189 = scalar_select %p188, %s19, 1
      %s190 = scalar_lea.vmem %s1, %s189
      %p191 = pneg %p76
      %p192 = pneg %p73
      %p193 = pneg %p104
      %p194 = pneg %p101
      %s195 = smul.u32 2, %s20
      %p196 = scmp.lt.s32.totalorder %s19, 1
      %s197 = scalar_select %p196, %s19, 1
      %p198 = scmp.lt.s32.totalorder %s195, 1
      %s199 = scalar_select %p198, %s195, 1
      %s200 = smul.addr %s197, 2
      %s201 = sadd.s32 %s199, %s200
      %s202 = scalar_lea.vmem %s2, %s201
      %p203 = pneg %p132
      %p204 = pneg %p129
      %s205 = smul.u32 2, %s20
      %p206 = scmp.lt.s32.totalorder %s19, 1
      %s207 = scalar_select %p206, %s19, 1
      %p208 = scmp.lt.s32.totalorder %s205, 1
      %s209 = scalar_select %p208, %s205, 1
      %s210 = smul.addr %s207, 2
      %s211 = sadd.s32 %s209, %s210
      %s212 = scalar_lea.vmem %s3, %s211
      %s213 = smul.u32 2, %s20
      %p214 = scmp.lt.s32.totalorder %s19, 1
      %s215 = scalar_select %p214, %s19, 1
      %p216 = scmp.lt.s32.totalorder %s213, 1
      %s217 = scalar_select %p216, %s213, 1
      %s218 = smul.addr %s215, 2
      %s219 = sadd.s32 %s217, %s218
      %s220 = smul.addr %s219, 8
      %s221 = scalar_lea.vmem %s0, %s220
      %s222 = smul.u32 2, %s20
      %p223 = scmp.lt.s32.totalorder %s19, 1
      %s224 = scalar_select %p223, %s19, 1
      %s225 = scalar_lea.vmem %s1, %s224
      %s226 = smul.u32 2, %s20
      %p227 = scmp.lt.s32.totalorder %s19, 1
      %s228 = scalar_select %p227, %s19, 1
      %p229 = scmp.lt.s32.totalorder %s226, 1
      %s230 = scalar_select %p229, %s226, 1
      %s231 = smul.addr %s228, 2
      %s232 = sadd.s32 %s230, %s231
      %s233 = scalar_lea.vmem %s2, %s232
      %s234 = smul.u32 2, %s20
      %s235 = smul.u32 2, %s20
      %p236 = scmp.lt.s32.totalorder %s19, 1
      %s237 = scalar_select %p236, %s19, 1
      %p238 = scmp.lt.s32.totalorder %s235, 1
      %s239 = scalar_select %p238, %s235, 1
      %s240 = smul.addr %s237, 2
      %s241 = sadd.s32 %s239, %s240
      %s242 = scalar_lea.vmem %s3, %s241
      %s243 = smul.u32 2, %s20
      %v244 = vld [vmem:[%s221] sm:$0xff]
      %v245 = vld [vmem:[%s221 + $0x8] sm:$0xff]
      %v246 = vld [vmem:[%s225] sm:$0x1]
      %v247 = vperm.slane %v246, 0
      %v248 = vlaneseq
      %v249 = vshrl.u32 %v248, 7
      %251 = vset.pattern.permute.xlu0 %v249
      %252 = vperm.xlu0 %251, %v247
      %v253 = vpop.permute.xlu0 %252
      %v254 = vmul.f32 %v244, %v253
      %v255 = vmul.f32 %v245, %v253
      %v256 = vrot.slane %v254, 4
      %v257 = vadd.f32 %v254, %v256
      %v258 = vrot.slane %v257, 2
      %v259 = vadd.f32 %v257, %v258
      %v260 = vrot.slane %v259, 1
      %v261 = vadd.f32 %v259, %v260
      %v262 = vrot.slane %v255, 4
      %v263 = vadd.f32 %v255, %v262
      %v264 = vrot.slane %v263, 2
      %v265 = vadd.f32 %v263, %v264
      %v266 = vrot.slane %v265, 1
      %v267 = vadd.f32 %v265, %v266
      %v270 = vrot.slane %v267, 7
      %vm271 = vcmask 1040384
      %v272 = vsel %vm271, %v261, %v270
      %v274 = vlaneseq
      %vm275 = vcmp.ge.s32.totalorder %v274, 0
      %vm276 = vcmp.lt.s32.totalorder %v274, 256
      %vm277 = vmand %vm275, %vm276
      %278 = vst.msk [vmem:[%s233] sm:$0x3] %vm277, %v272
      %v279 = vrot.slane %v254, 4
      %v280 = vmax.f32 %v254, %v279
      %v281 = vrot.slane %v280, 2
      %v282 = vmax.f32 %v280, %v281
      %v283 = vrot.slane %v282, 1
      %v284 = vmax.f32 %v282, %v283
      %v285 = vrot.slane %v255, 4
      %v286 = vmax.f32 %v255, %v285
      %v287 = vrot.slane %v286, 2
      %v288 = vmax.f32 %v286, %v287
      %v289 = vrot.slane %v288, 1
      %v290 = vmax.f32 %v288, %v289
      %v293 = vrot.slane %v290, 7
      %v294 = vsel %vm271, %v284, %v293
      %296 = vst.msk [vmem:[%s242] sm:$0x3] %vm277, %v294
      %s297 = smul.u32 2, %s20
      %p298 = scmp.lt.s32.totalorder %s19, 1
      %s299 = scalar_select %p298, %s19, 1
      %p300 = scmp.lt.s32.totalorder %s297, 1
      %s301 = scalar_select %p300, %s297, 1
      %s302 = smul.addr %s299, 2
      %s303 = sadd.s32 %s301, %s302
      %s304 = scalar_lea.vmem %s2, %s303
      %s305 = smul.u32 2, %s20
      %p306 = scmp.lt.s32.totalorder %s19, 1
      %s307 = scalar_select %p306, %s19, 1
      %p308 = scmp.lt.s32.totalorder %s305, 1
      %s309 = scalar_select %p308, %s305, 1
      %s310 = smul.addr %s307, 2
      %s311 = sadd.s32 %s309, %s310
      %s312 = scalar_lea.vmem %s3, %s311
      // Predicated region
      $region29: #{cbam_forward.4} parent=27 // pred_check
        %p313 = pneg %p101
      $region30: #{cbam_forward.4} parent=27 // pred_check_branch
        %315 = sbr.rel (%p313) target = $region32
      $region31: #{cbam_forward.4} parent=27 // pred_region
        %s316 = smul.u32 2, %s20
      $region32: #{cbam_forward.4} parent=27 // pred_fallthru
        _
      // Predicated region
      $region33: #{cbam_forward.4} parent=27 // pred_check
        %p317 = pneg %p129
      $region34: #{cbam_forward.4} parent=27 // pred_check_branch
        %319 = sbr.rel (%p317) target = $region36
      $region35: #{cbam_forward.4} parent=27 // pred_region
        %s320 = smul.u32 2, %s20
      $region36: #{cbam_forward.4} parent=27 // pred_fallthru
        _
    $region28: #{cbam_forward.4} parent=5 // pred_fallthru
      _
    %p321 = scmp.le.s32.totalorder 2, %s10
    // Predicated region
    $region37: #{cbam_forward.4} parent=5 // pred_check
      %p322 = pneg %p321
    $region38: #{cbam_forward.4} parent=5 // pred_check_branch
      %324 = sbr.rel (%p322) target = $region40
    $region39: #{cbam_forward.4} parent=5 // pred_region
      %s325 = ssub.s32 %s10, 2
      // Predicated region
      $region41: #{cbam_forward.4} parent=39 // pred_check
        %p326 = pneg %p107
      $region42: #{cbam_forward.4} parent=39 // pred_check_branch
        %328 = sbr.rel (%p326) target = $region44
      $region43: #{cbam_forward.4} parent=39 // pred_region
        %s329 = smul.u32 2, %s22
        %p330 = scmp.lt.s32.totalorder %s21, 1
        %s331 = scalar_select %p330, %s21, 1
        %p332 = scmp.lt.s32.totalorder %s329, 1
        %s333 = scalar_select %p332, %s329, 1
        %s334 = smul.addr %s331, 2
        %s335 = sadd.s32 %s333, %s334
        %s336 = scalar_lea.vmem %s2, %s335
      $region44: #{cbam_forward.4} parent=39 // pred_fallthru
        _
      // Predicated region
      $region45: #{cbam_forward.4} parent=39 // pred_check
        %p337 = pneg %p135
      $region46: #{cbam_forward.4} parent=39 // pred_check_branch
        %339 = sbr.rel (%p337) target = $region48
      $region47: #{cbam_forward.4} parent=39 // pred_region
        %s340 = smul.u32 2, %s22
        %p341 = scmp.lt.s32.totalorder %s21, 1
        %s342 = scalar_select %p341, %s21, 1
        %p343 = scmp.lt.s32.totalorder %s340, 1
        %s344 = scalar_select %p343, %s340, 1
        %s345 = smul.addr %s342, 2
        %s346 = sadd.s32 %s344, %s345
        %s347 = scalar_lea.vmem %s3, %s346
      $region48: #{cbam_forward.4} parent=39 // pred_fallthru
        _
    $region40: #{cbam_forward.4} parent=5 // pred_fallthru
      _
  $region6: #{cbam_forward.4} parent=0 // loop_footer
    %s14 = sadd.s32 1, %s10
  $region7: #{cbam_forward.4} parent=0 // loop_footer_branch
    %9 = sbr.rel target = $region3
  $region8: #{cbam_forward.4} parent=0 // loop_exit
    _

// kernel: cbam_forward.3
$region0: #{cbam_forward.3}
  #allocation0 [shape = 'u32[]', space=smem, size = 0x4, offset = 0x4, fixed_abs, tag = 'smem constant byte address 0x4 - core index']
  #allocation1 [shape = 'u32[72,128]{1,0:T(1,128)}', space=vmem, size = 0x9000, scoped, tag = 'internal scratch']
  %s0 = inlined_call_operand.vmem [shape: f32[2,8,256], index: 0, kind: input, shape index: {}]
  %s1 = inlined_call_operand.vmem [shape: f32[2,1,8], index: 1, kind: output, shape index: {0}]
  %s2 = inlined_call_operand.vmem [shape: f32[2,1,8], index: 2, kind: output, shape index: {1}]
  %3 = xla_tuple %s1, %s2
  %s4 = sld [smem:[#allocation0]]
  $region49: #{cbam_forward.3} parent=0
    _
  %s6 = ssub.s32 1, %s4
  %s7 = scalar_select 0, %s6, %s4
  loop: start=0, step=1, limit=4
  $region2: #{cbam_forward.3} parent=0 // loop_pre_header
    _
  $region3: #{cbam_forward.3} parent=0 // loop_header
    %s9 = sphi 0, %s13
    %p10 = scmp.ge.s32.totalorder %s9, 4
    %s16 = sphi 0, %s28
    %s17 = sphi 0, %s24
    %s18 = sphi 0, %s16
    %s19 = sphi 0, %s17
    %s20 = sphi 0, %s18
    %s21 = sphi 0, %s19
    %s33 = sphi 0, %s35
    %s36 = sphi 0, %s33
    %s37 = sphi 0, %s36
    %s53 = sphi 0, %s37
    %s59 = sphi 0, %s61
    %s62 = sphi 0, %s59
    %s63 = sphi 0, %s62
    %s79 = sphi 0, %s63
    %s85 = sphi 0, %s87
    %s88 = sphi 0, %s85
    %s89 = sphi 0, %s88
    %s105 = sphi 0, %s89
  $region4: #{cbam_forward.3} parent=0 // loop_header_branch
    %12 = sbr.rel (%p10) target = $region8
  $region5: #{cbam_forward.3} parent=0 // loop_body
    %s14 = ssub.s32 %s9, 1
    %s15 = ssub.s32 %s9, 2
    %s22 = sadd.s32 1, %s17
    %p23 = scmp.ge.s32.totalorder %s22, 1
    %s24 = scalar_select %p23, 0, %s22
    %s25 = sadd.s32 1, %s16
    %s26 = scalar_select %p23, %s25, %s16
    %p27 = scmp.ge.s32.totalorder %s26, 2
    %s28 = scalar_select %p27, 0, %s26
    %s29 = ssub.s32 %s16, %s28
    %s30 = ssub.s32 %s17, %s24
    %s31 = sor.u32 %s29, %s30
    %p32 = scmp.eq.s32.totalorder %s31, 0
    %s34 = sadd.s32 %s33, 1
    %s35 = scalar_select %p32, %s33, %s34
    %p38 = pneg %p32
    %p39 = scmp.eq.s32.totalorder %s9, 1
    %p40 = por %p38, %p39
    %p41 = scmp.ne.s32.totalorder %s33, %s36
    %p42 = scmp.eq.s32.totalorder %s9, 0
    %p43 = por %p41, %p42
    %p44 = scmp.ne.s32.totalorder %s33, %s36
    %p45 = scmp.eq.s32.totalorder %s14, 1
    %p46 = por %p44, %p45
    %p47 = scmp.ne.s32.totalorder %s36, %s37
    %p48 = scmp.eq.s32.totalorder %s14, 0
    %p49 = por %p47, %p48
    %p50 = scmp.ne.s32.totalorder %s36, %s37
    %p51 = scmp.eq.s32.totalorder %s15, 1
    %p52 = por %p50, %p51
    %p54 = scmp.ne.s32.totalorder %s37, %s53
    %p55 = scmp.eq.s32.totalorder %s15, 0
    %p56 = por %p54, %p55
    %s57 = ssub.s32 %s16, %s28
    %p58 = scmp.eq.s32.totalorder %s57, 0
    %s60 = sadd.s32 %s59, 1
    %s61 = scalar_select %p58, %s59, %s60
    %p64 = pneg %p58
    %p65 = scmp.eq.s32.totalorder %s9, 1
    %p66 = por %p64, %p65
    %p67 = scmp.ne.s32.totalorder %s59, %s62
    %p68 = scmp.eq.s32.totalorder %s9, 0
    %p69 = por %p67, %p68
    %p70 = scmp.ne.s32.totalorder %s59, %s62
    %p71 = scmp.eq.s32.totalorder %s14, 1
    %p72 = por %p70, %p71
    %p73 = scmp.ne.s32.totalorder %s62, %s63
    %p74 = scmp.eq.s32.totalorder %s14, 0
    %p75 = por %p73, %p74
    %p76 = scmp.ne.s32.totalorder %s62, %s63
    %p77 = scmp.eq.s32.totalorder %s15, 1
    %p78 = por %p76, %p77
    %p80 = scmp.ne.s32.totalorder %s63, %s79
    %p81 = scmp.eq.s32.totalorder %s15, 0
    %p82 = por %p80, %p81
    %s83 = ssub.s32 %s16, %s28
    %p84 = scmp.eq.s32.totalorder %s83, 0
    %s86 = sadd.s32 %s85, 1
    %s87 = scalar_select %p84, %s85, %s86
    %p90 = pneg %p84
    %p91 = scmp.eq.s32.totalorder %s9, 1
    %p92 = por %p90, %p91
    %p93 = scmp.ne.s32.totalorder %s85, %s88
    %p94 = scmp.eq.s32.totalorder %s9, 0
    %p95 = por %p93, %p94
    %p96 = scmp.ne.s32.totalorder %s85, %s88
    %p97 = scmp.eq.s32.totalorder %s14, 1
    %p98 = por %p96, %p97
    %p99 = scmp.ne.s32.totalorder %s88, %s89
    %p100 = scmp.eq.s32.totalorder %s14, 0
    %p101 = por %p99, %p100
    %p102 = scmp.ne.s32.totalorder %s88, %s89
    %p103 = scmp.eq.s32.totalorder %s15, 1
    %p104 = por %p102, %p103
    %p106 = scmp.ne.s32.totalorder %s89, %s105
    %p107 = scmp.eq.s32.totalorder %s15, 0
    %p108 = por %p106, %p107
    %p109 = scmp.le.s32.totalorder 1, %s9
    %p110 = scmp.lt.s32.totalorder %s9, 3
    %p111 = pnand %p109, %p110
    %p112 = pneg %p111
    // Predicated region
    $region9: #{cbam_forward.3} parent=5 // pred_check
      _
    $region10: #{cbam_forward.3} parent=5 // pred_check_branch
      %114 = sbr.rel (%p111) target = $region12
    $region11: #{cbam_forward.3} parent=5 // pred_region
      %s115 = ssub.s32 %s9, 1
    $region12: #{cbam_forward.3} parent=5 // pred_fallthru
      _
    %p116 = scmp.lt.s32.totalorder %s9, 2
    // Predicated region
    $region13: #{cbam_forward.3} parent=5 // pred_check
      %p117 = pneg %p116
    $region14: #{cbam_forward.3} parent=5 // pred_check_branch
      %119 = sbr.rel (%p117) target = $region16
    $region15: #{cbam_forward.3} parent=5 // pred_region
      // Predicated region
      $region17: #{cbam_forward.3} parent=15 // pred_check
        %p120 = pneg %p43
      $region18: #{cbam_forward.3} parent=15 // pred_check_branch
        %122 = sbr.rel (%p120) target = $region20
      $region19: #{cbam_forward.3} parent=15 // pred_region
        %s123 = smul.u32 2, %s17
        %p124 = scmp.lt.s32.totalorder %s16, 1
        %s125 = scalar_select %p124, %s16, 1
        %p126 = scmp.lt.s32.totalorder %s123, 1
        %s127 = scalar_select %p126, %s123, 1
        %s128 = smul.addr %s125, 2
        %s129 = sadd.s32 %s127, %s128
        %s130 = smul.addr %s129, 8
        %s131 = scalar_lea.vmem %s0, %s130
        %s132 = smul.u32 2, %s17
      $region20: #{cbam_forward.3} parent=15 // pred_fallthru
        _
    $region16: #{cbam_forward.3} parent=5 // pred_fallthru
      _
    %p133 = scmp.le.s32.totalorder 1, %s9
    %p134 = scmp.lt.s32.totalorder %s9, 3
    %p135 = pnand %p133, %p134
    %p136 = pneg %p135
    // Predicated region
    $region21: #{cbam_forward.3} parent=5 // pred_check
      _
    $region22: #{cbam_forward.3} parent=5 // pred_check_branch
      %138 = sbr.rel (%p135) target = $region24
    $region23: #{cbam_forward.3} parent=5 // pred_region
      %s139 = ssub.s32 %s9, 1
      %s140 = smul.u32 2, %s19
      %p141 = scmp.lt.s32.totalorder %s18, 1
      %s142 = scalar_select %p141, %s18, 1
      %p143 = scmp.lt.s32.totalorder %s140, 1
      %s144 = scalar_select %p143, %s140, 1
      %s145 = smul.addr %s142, 2
      %s146 = sadd.s32 %s144, %s145
      %s147 = smul.addr %s146, 8
      %s148 = scalar_lea.vmem %s0, %s147
      %p149 = pneg %p49
      %p150 = pneg %p46
      %p151 = pneg %p75
      %p152 = pneg %p72
      %p153 = scmp.lt.s32.totalorder %s18, 1
      %s154 = scalar_select %p153, %s18, 1
      %s155 = scalar_lea.vmem %s1, %s154
      %p156 = pneg %p101
      %p157 = pneg %p98
      %p158 = scmp.lt.s32.totalorder %s18, 1
      %s159 = scalar_select %p158, %s18, 1
      %s160 = scalar_lea.vmem %s2, %s159
      %s161 = smul.u32 2, %s19
      %p162 = scmp.lt.s32.totalorder %s18, 1
      %s163 = scalar_select %p162, %s18, 1
      %p164 = scmp.lt.s32.totalorder %s161, 1
      %s165 = scalar_select %p164, %s161, 1
      %s166 = smul.addr %s163, 2
      %s167 = sadd.s32 %s165, %s166
      %s168 = smul.addr %s167, 8
      %s169 = scalar_lea.vmem %s0, %s168
      %s170 = smul.u32 2, %s19
      %p171 = scmp.lt.s32.totalorder %s18, 1
      %s172 = scalar_select %p171, %s18, 1
      %s173 = scalar_lea.vmem %s1, %s172
      %p174 = scmp.lt.s32.totalorder %s18, 1
      %s175 = scalar_select %p174, %s18, 1
      %s176 = scalar_lea.vmem %s2, %s175
      %p177 = scmp.eq.s32.totalorder %s19, 0
      // Predicated region
      $region25: #{cbam_forward.3} parent=23 // pred_check
        %p178 = pneg %p177
      $region26: #{cbam_forward.3} parent=23 // pred_check_branch
        %180 = sbr.rel (%p178) target = $region28
      $region27: #{cbam_forward.3} parent=23 // pred_region
        %vm181 = vcmask 57344
        %182 = vst.msk [vmem:[%s173] sm:$0x1] %vm181, 0.0
        %183 = vst.msk [vmem:[%s176] sm:$0x1] %vm181, -inf
      $region28: #{cbam_forward.3} parent=23 // pred_fallthru
        _
      %v184 = vld [vmem:[%s169] sm:$0xff]
      %v185 = vld [vmem:[%s169 + $0x8] sm:$0xff]
      %v186 = vld [vmem:[%s173] sm:$0x1]
      %v187 = vadd.f32 %v184, %v185
      %188 = vadd.xlane.f32.xlu0 %v187
      %v189 = vpop.xlane.xlu0 %188
      %v191 = vperm.slane %v189, 0
      %v192 = vperm.slane %v189, 1
      %v193 = vperm.slane %v189, 2
      %v194 = vperm.slane %v189, 3
      %v195 = vperm.slane %v189, 4
      %v196 = vperm.slane %v189, 5
      %v197 = vperm.slane %v189, 6
      %v198 = vperm.slane %v189, 7
      %199 = vst [vmem:[#allocation1] ss:$9 sm:$0xff] %v191
      %s200 = scalar_lea.vmem [#allocation1], 1
      %201 = vst [vmem:[%s200] ss:$9 sm:$0xff] %v192
      %s202 = scalar_lea.vmem [#allocation1], 2
      %203 = vst [vmem:[%s202] ss:$9 sm:$0xff] %v193
      %s204 = scalar_lea.vmem [#allocation1], 3
      %205 = vst [vmem:[%s204] ss:$9 sm:$0xff] %v194
      %s206 = scalar_lea.vmem [#allocation1], 4
      %207 = vst [vmem:[%s206] ss:$9 sm:$0xff] %v195
      %s208 = scalar_lea.vmem [#allocation1], 5
      %209 = vst [vmem:[%s208] ss:$9 sm:$0xff] %v196
      %s210 = scalar_lea.vmem [#allocation1], 6
      %211 = vst [vmem:[%s210] ss:$9 sm:$0xff] %v197
      %s212 = scalar_lea.vmem [#allocation1], 7
      %213 = vst [vmem:[%s212] ss:$9 sm:$0xff] %v198
      %v214 = vld [vmem:[#allocation1] sm:$0xff]
      %215 = vset.pattern.permute.xlu0 0
      %216 = vperm.xlu0 %215, %v214
      %v217 = vpop.permute.xlu0 %216
      %v218 = vlaneseq
      %v219 = vand.u32 %v218, 127
      %v220 = vperm.slane %v217, %v219
      %v222 = vadd.f32 %v186, %v220
      %vm223 = vcmask 57344
      %224 = vst.msk [vmem:[%s173] sm:$0x1] %vm223, %v222
      %v225 = vld [vmem:[%s176] sm:$0x1]
      %v226 = vmax.f32 %v184, %v185
      %227 = vmax.xlane.f32.xlu0 %v226
      %v228 = vpop.xlane.xlu0 %227
      %v230 = vperm.slane %v228, 0
      %v231 = vperm.slane %v228, 1
      %v232 = vperm.slane %v228, 2
      %v233 = vperm.slane %v228, 3
      %v234 = vperm.slane %v228, 4
      %v235 = vperm.slane %v228, 5
      %v236 = vperm.slane %v228, 6
      %v237 = vperm.slane %v228, 7
      %238 = vst [vmem:[#allocation1] ss:$9 sm:$0xff] %v230
      %s239 = scalar_lea.vmem [#allocation1], 1
      %240 = vst [vmem:[%s239] ss:$9 sm:$0xff] %v231
      %s241 = scalar_lea.vmem [#allocation1], 2
      %242 = vst [vmem:[%s241] ss:$9 sm:$0xff] %v232
      %s243 = scalar_lea.vmem [#allocation1], 3
      %244 = vst [vmem:[%s243] ss:$9 sm:$0xff] %v233
      %s245 = scalar_lea.vmem [#allocation1], 4
      %246 = vst [vmem:[%s245] ss:$9 sm:$0xff] %v234
      %s247 = scalar_lea.vmem [#allocation1], 5
      %248 = vst [vmem:[%s247] ss:$9 sm:$0xff] %v235
      %s249 = scalar_lea.vmem [#allocation1], 6
      %250 = vst [vmem:[%s249] ss:$9 sm:$0xff] %v236
      %s251 = scalar_lea.vmem [#allocation1], 7
      %252 = vst [vmem:[%s251] ss:$9 sm:$0xff] %v237
      %v253 = vld [vmem:[#allocation1] sm:$0xff]
      %254 = vset.pattern.permute.xlu0 0
      %255 = vperm.xlu0 %254, %v253
      %v256 = vpop.permute.xlu0 %255
      %v257 = vperm.slane %v256, %v219
      %v259 = vmax.f32 %v225, %v257
      %260 = vst.msk [vmem:[%s176] sm:$0x1] %vm223, %v259
      %p261 = scmp.lt.s32.totalorder %s18, 1
      %s262 = scalar_select %p261, %s18, 1
      %s263 = scalar_lea.vmem %s1, %s262
      %p264 = scmp.lt.s32.totalorder %s18, 1
      %s265 = scalar_select %p264, %s18, 1
      %s266 = scalar_lea.vmem %s2, %s265
      // Predicated region
      $region29: #{cbam_forward.3} parent=23 // pred_check
        %p267 = pneg %p72
      $region30: #{cbam_forward.3} parent=23 // pred_check_branch
        %269 = sbr.rel (%p267) target = $region32
      $region31: #{cbam_forward.3} parent=23 // pred_region
        _
      $region32: #{cbam_forward.3} parent=23 // pred_fallthru
        _
      // Predicated region
      $region33: #{cbam_forward.3} parent=23 // pred_check
        %p270 = pneg %p98
      $region34: #{cbam_forward.3} parent=23 // pred_check_branch
        %272 = sbr.rel (%p270) target = $region36
      $region35: #{cbam_forward.3} parent=23 // pred_region
        _
      $region36: #{cbam_forward.3} parent=23 // pred_fallthru
        _
    $region24: #{cbam_forward.3} parent=5 // pred_fallthru
      _
    %p273 = scmp.le.s32.totalorder 2, %s9
    // Predicated region
    $region37: #{cbam_forward.3} parent=5 // pred_check
      %p274 = pneg %p273
    $region38: #{cbam_forward.3} parent=5 // pred_check_branch
      %276 = sbr.rel (%p274) target = $region40
    $region39: #{cbam_forward.3} parent=5 // pred_region
      %s277 = ssub.s32 %s9, 2
      // Predicated region
      $region41: #{cbam_forward.3} parent=39 // pred_check
        %p278 = pneg %p78
      $region42: #{cbam_forward.3} parent=39 // pred_check_branch
        %280 = sbr.rel (%p278) target = $region44
      $region43: #{cbam_forward.3} parent=39 // pred_region
        %p281 = scmp.lt.s32.totalorder %s20, 1
        %s282 = scalar_select %p281, %s20, 1
        %s283 = scalar_lea.vmem %s1, %s282
      $region44: #{cbam_forward.3} parent=39 // pred_fallthru
        _
      // Predicated region
      $region45: #{cbam_forward.3} parent=39 // pred_check
        %p284 = pneg %p104
      $region46: #{cbam_forward.3} parent=39 // pred_check_branch
        %286 = sbr.rel (%p284) target = $region48
      $region47: #{cbam_forward.3} parent=39 // pred_region
        %p287 = scmp.lt.s32.totalorder %s20, 1
        %s288 = scalar_select %p287, %s20, 1
        %s289 = scalar_lea.vmem %s2, %s288
      $region48: #{cbam_forward.3} parent=39 // pred_fallthru
        _
    $region40: #{cbam_forward.3} parent=5 // pred_fallthru
      _
  $region6: #{cbam_forward.3} parent=0 // loop_footer
    %s13 = sadd.s32 1, %s9
  $region7: #{cbam_forward.3} parent=0 // loop_footer_branch
    %8 = sbr.rel target = $region3
  $region8: #{cbam_forward.3} parent=0 // loop_exit
    _

// kernel: cbam_forward.5
$region0: #{cbam_forward.5}
  #allocation0 [shape = 'u32[]', space=smem, size = 0x4, offset = 0x4, fixed_abs, tag = 'smem constant byte address 0x4 - core index']
  #allocation1 [shape = 'u32[72,128]{1,0:T(1,128)}', space=vmem, size = 0x9000, scoped, tag = 'internal scratch']
  %s0 = inlined_call_operand.vmem [shape: f32[2,8,256], index: 0, kind: input, shape index: {}]
  %s1 = inlined_call_operand.vmem [shape: f32[2,1,8], index: 1, kind: input, shape index: {}]
  %s2 = inlined_call_operand.vmem [shape: f32[2,1,256], index: 2, kind: input, shape index: {}]
  %s3 = inlined_call_operand.vmem [shape: f32[2,8,256], index: 3, kind: output, shape index: {}]
  %s4 = sld [smem:[#allocation0]]
  $region45: #{cbam_forward.5} parent=0
    _
  %s6 = ssub.s32 1, %s4
  %s7 = scalar_select 0, %s6, %s4
  loop: start=0, step=1, limit=4
  $region2: #{cbam_forward.5} parent=0 // loop_pre_header
    _
  $region3: #{cbam_forward.5} parent=0 // loop_header
    %s9 = sphi 0, %s13
    %p10 = scmp.ge.s32.totalorder %s9, 4
    %s16 = sphi 0, %s28
    %s17 = sphi 0, %s24
    %s18 = sphi 0, %s16
    %s19 = sphi 0, %s17
    %s20 = sphi 0, %s18
    %s21 = sphi 0, %s19
    %s33 = sphi 0, %s35
    %s36 = sphi 0, %s33
    %s37 = sphi 0, %s36
    %s53 = sphi 0, %s37
    %s59 = sphi 0, %s61
    %s62 = sphi 0, %s59
    %s63 = sphi 0, %s62
    %s79 = sphi 0, %s63
    %s87 = sphi 0, %s89
    %s90 = sphi 0, %s87
    %s91 = sphi 0, %s90
    %s107 = sphi 0, %s91
    %s115 = sphi 0, %s117
    %s118 = sphi 0, %s115
    %s119 = sphi 0, %s118
    %s135 = sphi 0, %s119
  $region4: #{cbam_forward.5} parent=0 // loop_header_branch
    %12 = sbr.rel (%p10) target = $region8
  $region5: #{cbam_forward.5} parent=0 // loop_body
    %s14 = ssub.s32 %s9, 1
    %s15 = ssub.s32 %s9, 2
    %s22 = sadd.s32 1, %s17
    %p23 = scmp.ge.s32.totalorder %s22, 1
    %s24 = scalar_select %p23, 0, %s22
    %s25 = sadd.s32 1, %s16
    %s26 = scalar_select %p23, %s25, %s16
    %p27 = scmp.ge.s32.totalorder %s26, 2
    %s28 = scalar_select %p27, 0, %s26
    %s29 = ssub.s32 %s16, %s28
    %s30 = ssub.s32 %s17, %s24
    %s31 = sor.u32 %s29, %s30
    %p32 = scmp.eq.s32.totalorder %s31, 0
    %s34 = sadd.s32 %s33, 1
    %s35 = scalar_select %p32, %s33, %s34
    %p38 = pneg %p32
    %p39 = scmp.eq.s32.totalorder %s9, 1
    %p40 = por %p38, %p39
    %p41 = scmp.ne.s32.totalorder %s33, %s36
    %p42 = scmp.eq.s32.totalorder %s9, 0
    %p43 = por %p41, %p42
    %p44 = scmp.ne.s32.totalorder %s33, %s36
    %p45 = scmp.eq.s32.totalorder %s14, 1
    %p46 = por %p44, %p45
    %p47 = scmp.ne.s32.totalorder %s36, %s37
    %p48 = scmp.eq.s32.totalorder %s14, 0
    %p49 = por %p47, %p48
    %p50 = scmp.ne.s32.totalorder %s36, %s37
    %p51 = scmp.eq.s32.totalorder %s15, 1
    %p52 = por %p50, %p51
    %p54 = scmp.ne.s32.totalorder %s37, %s53
    %p55 = scmp.eq.s32.totalorder %s15, 0
    %p56 = por %p54, %p55
    %s57 = ssub.s32 %s16, %s28
    %p58 = scmp.eq.s32.totalorder %s57, 0
    %s60 = sadd.s32 %s59, 1
    %s61 = scalar_select %p58, %s59, %s60
    %p64 = pneg %p58
    %p65 = scmp.eq.s32.totalorder %s9, 1
    %p66 = por %p64, %p65
    %p67 = scmp.ne.s32.totalorder %s59, %s62
    %p68 = scmp.eq.s32.totalorder %s9, 0
    %p69 = por %p67, %p68
    %p70 = scmp.ne.s32.totalorder %s59, %s62
    %p71 = scmp.eq.s32.totalorder %s14, 1
    %p72 = por %p70, %p71
    %p73 = scmp.ne.s32.totalorder %s62, %s63
    %p74 = scmp.eq.s32.totalorder %s14, 0
    %p75 = por %p73, %p74
    %p76 = scmp.ne.s32.totalorder %s62, %s63
    %p77 = scmp.eq.s32.totalorder %s15, 1
    %p78 = por %p76, %p77
    %p80 = scmp.ne.s32.totalorder %s63, %s79
    %p81 = scmp.eq.s32.totalorder %s15, 0
    %p82 = por %p80, %p81
    %s83 = ssub.s32 %s16, %s28
    %s84 = ssub.s32 %s17, %s24
    %s85 = sor.u32 %s83, %s84
    %p86 = scmp.eq.s32.totalorder %s85, 0
    %s88 = sadd.s32 %s87, 1
    %s89 = scalar_select %p86, %s87, %s88
    %p92 = pneg %p86
    %p93 = scmp.eq.s32.totalorder %s9, 1
    %p94 = por %p92, %p93
    %p95 = scmp.ne.s32.totalorder %s87, %s90
    %p96 = scmp.eq.s32.totalorder %s9, 0
    %p97 = por %p95, %p96
    %p98 = scmp.ne.s32.totalorder %s87, %s90
    %p99 = scmp.eq.s32.totalorder %s14, 1
    %p100 = por %p98, %p99
    %p101 = scmp.ne.s32.totalorder %s90, %s91
    %p102 = scmp.eq.s32.totalorder %s14, 0
    %p103 = por %p101, %p102
    %p104 = scmp.ne.s32.totalorder %s90, %s91
    %p105 = scmp.eq.s32.totalorder %s15, 1
    %p106 = por %p104, %p105
    %p108 = scmp.ne.s32.totalorder %s91, %s107
    %p109 = scmp.eq.s32.totalorder %s15, 0
    %p110 = por %p108, %p109
    %s111 = ssub.s32 %s16, %s28
    %s112 = ssub.s32 %s17, %s24
    %s113 = sor.u32 %s111, %s112
    %p114 = scmp.eq.s32.totalorder %s113, 0
    %s116 = sadd.s32 %s115, 1
    %s117 = scalar_select %p114, %s115, %s116
    %p120 = pneg %p114
    %p121 = scmp.eq.s32.totalorder %s9, 1
    %p122 = por %p120, %p121
    %p123 = scmp.ne.s32.totalorder %s115, %s118
    %p124 = scmp.eq.s32.totalorder %s9, 0
    %p125 = por %p123, %p124
    %p126 = scmp.ne.s32.totalorder %s115, %s118
    %p127 = scmp.eq.s32.totalorder %s14, 1
    %p128 = por %p126, %p127
    %p129 = scmp.ne.s32.totalorder %s118, %s119
    %p130 = scmp.eq.s32.totalorder %s14, 0
    %p131 = por %p129, %p130
    %p132 = scmp.ne.s32.totalorder %s118, %s119
    %p133 = scmp.eq.s32.totalorder %s15, 1
    %p134 = por %p132, %p133
    %p136 = scmp.ne.s32.totalorder %s119, %s135
    %p137 = scmp.eq.s32.totalorder %s15, 0
    %p138 = por %p136, %p137
    %p139 = scmp.le.s32.totalorder 1, %s9
    %p140 = scmp.lt.s32.totalorder %s9, 3
    %p141 = pnand %p139, %p140
    %p142 = pneg %p141
    // Predicated region
    $region9: #{cbam_forward.5} parent=5 // pred_check
      _
    $region10: #{cbam_forward.5} parent=5 // pred_check_branch
      %144 = sbr.rel (%p141) target = $region12
    $region11: #{cbam_forward.5} parent=5 // pred_region
      %s145 = ssub.s32 %s9, 1
    $region12: #{cbam_forward.5} parent=5 // pred_fallthru
      _
    %p146 = scmp.lt.s32.totalorder %s9, 2
    // Predicated region
    $region13: #{cbam_forward.5} parent=5 // pred_check
      %p147 = pneg %p146
    $region14: #{cbam_forward.5} parent=5 // pred_check_branch
      %149 = sbr.rel (%p147) target = $region16
    $region15: #{cbam_forward.5} parent=5 // pred_region
      // Predicated region
      $region17: #{cbam_forward.5} parent=15 // pred_check
        %p150 = pneg %p43
      $region18: #{cbam_forward.5} parent=15 // pred_check_branch
        %152 = sbr.rel (%p150) target = $region20
      $region19: #{cbam_forward.5} parent=15 // pred_region
        %s153 = smul.u32 2, %s17
        %p154 = scmp.lt.s32.totalorder %s16, 1
        %s155 = scalar_select %p154, %s16, 1
        %p156 = scmp.lt.s32.totalorder %s153, 1
        %s157 = scalar_select %p156, %s153, 1
        %s158 = smul.addr %s155, 2
        %s159 = sadd.s32 %s157, %s158
        %s160 = smul.addr %s159, 8
        %s161 = scalar_lea.vmem %s0, %s160
        %s162 = smul.u32 2, %s17
      $region20: #{cbam_forward.5} parent=15 // pred_fallthru
        _
      // Predicated region
      $region21: #{cbam_forward.5} parent=15 // pred_check
        %p163 = pneg %p69
      $region22: #{cbam_forward.5} parent=15 // pred_check_branch
        %165 = sbr.rel (%p163) target = $region24
      $region23: #{cbam_forward.5} parent=15 // pred_region
        %p166 = scmp.lt.s32.totalorder %s16, 1
        %s167 = scalar_select %p166, %s16, 1
        %s168 = scalar_lea.vmem %s1, %s167
      $region24: #{cbam_forward.5} parent=15 // pred_fallthru
        _
      // Predicated region
      $region25: #{cbam_forward.5} parent=15 // pred_check
        %p169 = pneg %p97
      $region26: #{cbam_forward.5} parent=15 // pred_check_branch
        %171 = sbr.rel (%p169) target = $region28
      $region27: #{cbam_forward.5} parent=15 // pred_region
        %s172 = smul.u32 2, %s17
        %p173 = scmp.lt.s32.totalorder %s16, 1
        %s174 = scalar_select %p173, %s16, 1
        %p175 = scmp.lt.s32.totalorder %s172, 1
        %s176 = scalar_select %p175, %s172, 1
        %s177 = smul.addr %s174, 2
        %s178 = sadd.s32 %s176, %s177
        %s179 = scalar_lea.vmem %s2, %s178
        %s180 = smul.u32 2, %s17
      $region28: #{cbam_forward.5} parent=15 // pred_fallthru
        _
    $region16: #{cbam_forward.5} parent=5 // pred_fallthru
      _
    %p181 = scmp.le.s32.totalorder 1, %s9
    %p182 = scmp.lt.s32.totalorder %s9, 3
    %p183 = pnand %p181, %p182
    %p184 = pneg %p183
    // Predicated region
    $region29: #{cbam_forward.5} parent=5 // pred_check
      _
    $region30: #{cbam_forward.5} parent=5 // pred_check_branch
      %186 = sbr.rel (%p183) target = $region32
    $region31: #{cbam_forward.5} parent=5 // pred_region
      %s187 = ssub.s32 %s9, 1
      %s188 = smul.u32 2, %s19
      %p189 = scmp.lt.s32.totalorder %s18, 1
      %s190 = scalar_select %p189, %s18, 1
      %p191 = scmp.lt.s32.totalorder %s188, 1
      %s192 = scalar_select %p191, %s188, 1
      %s193 = smul.addr %s190, 2
      %s194 = sadd.s32 %s192, %s193
      %s195 = smul.addr %s194, 8
      %s196 = scalar_lea.vmem %s0, %s195
      %p197 = pneg %p49
      %p198 = pneg %p46
      %p199 = scmp.lt.s32.totalorder %s18, 1
      %s200 = scalar_select %p199, %s18, 1
      %s201 = scalar_lea.vmem %s1, %s200
      %p202 = pneg %p75
      %p203 = pneg %p72
      %s204 = smul.u32 2, %s19
      %p205 = scmp.lt.s32.totalorder %s18, 1
      %s206 = scalar_select %p205, %s18, 1
      %p207 = scmp.lt.s32.totalorder %s204, 1
      %s208 = scalar_select %p207, %s204, 1
      %s209 = smul.addr %s206, 2
      %s210 = sadd.s32 %s208, %s209
      %s211 = scalar_lea.vmem %s2, %s210
      %p212 = pneg %p103
      %p213 = pneg %p100
      %p214 = pneg %p131
      %p215 = pneg %p128
      %s216 = smul.u32 2, %s19
      %p217 = scmp.lt.s32.totalorder %s18, 1
      %s218 = scalar_select %p217, %s18, 1
      %p219 = scmp.lt.s32.totalorder %s216, 1
      %s220 = scalar_select %p219, %s216, 1
      %s221 = smul.addr %s218, 2
      %s222 = sadd.s32 %s220, %s221
      %s223 = smul.addr %s222, 8
      %s224 = scalar_lea.vmem %s3, %s223
      %s225 = smul.u32 2, %s19
      %p226 = scmp.lt.s32.totalorder %s18, 1
      %s227 = scalar_select %p226, %s18, 1
      %p228 = scmp.lt.s32.totalorder %s225, 1
      %s229 = scalar_select %p228, %s225, 1
      %s230 = smul.addr %s227, 2
      %s231 = sadd.s32 %s229, %s230
      %s232 = smul.addr %s231, 8
      %s233 = scalar_lea.vmem %s0, %s232
      %s234 = smul.u32 2, %s19
      %p235 = scmp.lt.s32.totalorder %s18, 1
      %s236 = scalar_select %p235, %s18, 1
      %s237 = scalar_lea.vmem %s1, %s236
      %s238 = smul.u32 2, %s19
      %p239 = scmp.lt.s32.totalorder %s18, 1
      %s240 = scalar_select %p239, %s18, 1
      %p241 = scmp.lt.s32.totalorder %s238, 1
      %s242 = scalar_select %p241, %s238, 1
      %s243 = smul.addr %s240, 2
      %s244 = sadd.s32 %s242, %s243
      %s245 = scalar_lea.vmem %s2, %s244
      %s246 = smul.u32 2, %s19
      %s247 = smul.u32 2, %s19
      %p248 = scmp.lt.s32.totalorder %s18, 1
      %s249 = scalar_select %p248, %s18, 1
      %p250 = scmp.lt.s32.totalorder %s247, 1
      %s251 = scalar_select %p250, %s247, 1
      %s252 = smul.addr %s249, 2
      %s253 = sadd.s32 %s251, %s252
      %s254 = smul.addr %s253, 8
      %s255 = scalar_lea.vmem %s3, %s254
      %s256 = smul.u32 2, %s19
      %v257 = vld [vmem:[%s233] sm:$0xff]
      %v258 = vld [vmem:[%s233 + $0x8] sm:$0xff]
      %v259 = vld [vmem:[%s237] sm:$0x1]
      %v260 = vld [vmem:[%s245] sm:$0x3]
      %v261 = vperm.slane %v259, 0
      %v262 = vlaneseq
      %v263 = vshrl.u32 %v262, 7
      %265 = vset.pattern.permute.xlu0 %v263
      %266 = vperm.xlu0 %265, %v261
      %v267 = vpop.permute.xlu0 %266
      %v268 = vmul.f32 %v257, %v267
      %v269 = vmul.f32 %v258, %v267
      %v271 = vperm.slane %v260, 0
      %v272 = vperm.slane %v260, 1
      %v275 = vmul.f32 %v268, %v271
      %v276 = vmul.f32 %v269, %v272
      %277 = vst [vmem:[%s255] sm:$0xff] %v275
      %278 = vst [vmem:[%s255 + $0x8] sm:$0xff] %v276
      %s279 = smul.u32 2, %s19
      %p280 = scmp.lt.s32.totalorder %s18, 1
      %s281 = scalar_select %p280, %s18, 1
      %p282 = scmp.lt.s32.totalorder %s279, 1
      %s283 = scalar_select %p282, %s279, 1
      %s284 = smul.addr %s281, 2
      %s285 = sadd.s32 %s283, %s284
      %s286 = smul.addr %s285, 8
      %s287 = scalar_lea.vmem %s3, %s286
      // Predicated region
      $region33: #{cbam_forward.5} parent=31 // pred_check
        %p288 = pneg %p128
      $region34: #{cbam_forward.5} parent=31 // pred_check_branch
        %290 = sbr.rel (%p288) target = $region36
      $region35: #{cbam_forward.5} parent=31 // pred_region
        %s291 = smul.u32 2, %s19
      $region36: #{cbam_forward.5} parent=31 // pred_fallthru
        _
    $region32: #{cbam_forward.5} parent=5 // pred_fallthru
      _
    %p292 = scmp.le.s32.totalorder 2, %s9
    // Predicated region
    $region37: #{cbam_forward.5} parent=5 // pred_check
      %p293 = pneg %p292
    $region38: #{cbam_forward.5} parent=5 // pred_check_branch
      %295 = sbr.rel (%p293) target = $region40
    $region39: #{cbam_forward.5} parent=5 // pred_region
      %s296 = ssub.s32 %s9, 2
      // Predicated region
      $region41: #{cbam_forward.5} parent=39 // pred_check
        %p297 = pneg %p134
      $region42: #{cbam_forward.5} parent=39 // pred_check_branch
        %299 = sbr.rel (%p297) target = $region44
      $region43: #{cbam_forward.5} parent=39 // pred_region
        %s300 = smul.u32 2, %s21
        %p301 = scmp.lt.s32.totalorder %s20, 1
        %s302 = scalar_select %p301, %s20, 1
        %p303 = scmp.lt.s32.totalorder %s300, 1
        %s304 = scalar_select %p303, %s300, 1
        %s305 = smul.addr %s302, 2
        %s306 = sadd.s32 %s304, %s305
        %s307 = smul.addr %s306, 8
        %s308 = scalar_lea.vmem %s3, %s307
      $region44: #{cbam_forward.5} parent=39 // pred_fallthru
        _
    $region40: #{cbam_forward.5} parent=5 // pred_fallthru
      _
  $region6: #{cbam_forward.5} parent=0 // loop_footer
    %s13 = sadd.s32 1, %s9
  $region7: #{cbam_forward.5} parent=0 // loop_footer_branch
    %8 = sbr.rel target = $region3
  $region8: #{cbam_forward.5} parent=0 // loop_exit
    _

</llo_original>
